<compile_context>
chip_gen: v7x
topology: tpu7x:2x2x1
jax: 0.10.0
libtpu: 0.0.40
codegen_flags: <defaults>
</compile_context>

<pallas_src>
import math
from functools import partial

import jax
import jax.numpy as jnp
from jax.experimental import pallas as pl
from jax.experimental.pallas import tpu as pltpu

LANE = 128


def _round_up(n, m):
    return ((n + m - 1) // m) * m


# ----------------------------------------------------------------------------- kernel
def hnet_kernel(x_ref, w_in_ref, w2_ref, w4_ref, b4_ref, o_ref):
    """One batch tile.

    x      : (bt, d_p)            = [q | v | 1 | 0-pad]          (compute dtype)
    w_in   : (d_p, inter_p+cm_p)  block-diag [w1 | w3_tiled], biases in ones-row
    w2     : (inter_p, cm_p)      k-major w2, b2 folded via carrier row
    w4     : (cm_p, out_dim)      row-expanded w4
    b4     : (1, out_dim)         f32
    """
    f32 = jnp.float32
    inter_p = w2_ref.shape[0]

    # Fused hyper_control-layer-1 + hyper_main_in: one matmul, then ReLU.
    hlt = jnp.dot(x_ref[...], w_in_ref[...], preferred_element_type=f32)
    hlt = jnp.maximum(hlt, 0.0)                       # (bt, inter_p + cm_p)

    h = hlt[:, :inter_p]                              # hidden (carrier lane == 1)
    lt = hlt[:, inter_p:]                             # left, tiled cms copies (k-major)

    # control matrix, k-major flat layout; b2 added via the carrier row of w2.
    cm = jnp.dot(h.astype(w2_ref.dtype), w2_ref[...],
                 preferred_element_type=f32)          # (bt, cm_p)

    # einsum('bj,bjk->bk'): elementwise product; the grouped sum over j is
    # folded into the row-expanded w4 of the final matmul.
    prod = lt * cm

    out = jnp.dot(prod.astype(w4_ref.dtype), w4_ref[...],
                  preferred_element_type=f32) + b4_ref[...]
    o_ref[...] = jnp.maximum(out, 0.0).astype(o_ref.dtype)


# ----------------------------------------------------------------------------- param prep (run ONCE)
def prepare_params(params, cms, compute_dtype=jnp.bfloat16):
    """Re-layout + zero-pad nn.Linear params for the fused kernel.

    Runs once outside the forward; the returned dict is what hnet_forward
    consumes.  All pads are zeros, so nothing leaks through ReLU downstream.
    """
    w1, b1 = params["w1"], params["b1"]   # (q_in, inter), (1, inter)
    w2, b2 = params["w2"], params["b2"]   # (inter, cms*cms), (1, cms*cms)
    w3, b3 = params["w3"], params["b3"]   # (v_in, cms), (1, cms)
    w4, b4 = params["w4"], params["b4"]   # (cms, out_dim), (1, out_dim)

    q_in, inter = w1.shape
    v_in = w3.shape[0]
    out_dim = w4.shape[1]
    cm_flat = cms * cms

    # --- mixing re-layout (index plumbing only) ---
    kmajor = jnp.arange(cm_flat).reshape(cms, cms).T.reshape(-1)   # [k*cms+j] -> j*cms+k
    w2k, b2k = w2[:, kmajor], b2[:, kmajor]
    tile_idx = jnp.tile(jnp.arange(cms), cms)                      # [k*cms+j] -> j
    w3t, b3t = w3[:, tile_idx], b3[:, tile_idx]
    rep_idx = jnp.repeat(jnp.arange(cms), cms)                     # [k*cms+j] -> k
    w4e = w4[rep_idx, :]

    # --- fused, padded layout ---
    inter_p = _round_up(inter + 1, LANE)       # +1 carrier lane (carries b2)
    cm_p = _round_up(cm_flat, LANE)
    d_p = _round_up(q_in + v_in + 1, 8)        # +1 ones column (carries b1/b3)
    ones_row = q_in + v_in

    w_in = jnp.zeros((d_p, inter_p + cm_p), jnp.float32)
    w_in = w_in.at[:q_in, :inter].set(w1)                                   # q -> h
    w_in = w_in.at[q_in:q_in + v_in, inter_p:inter_p + cm_flat].set(w3t)    # v -> left (tiled)
    w_in = w_in.at[ones_row, :inter].set(b1[0])                             # b1 via ones col
    w_in = w_in.at[ones_row, inter_p:inter_p + cm_flat].set(b3t[0])         # b3 via ones col
    w_in = w_in.at[ones_row, inter].set(1.0)                                # carrier: ReLU(1)=1

    w2f = jnp.zeros((inter_p, cm_p), jnp.float32)
    w2f = w2f.at[:inter, :cm_flat].set(w2k)
    w2f = w2f.at[inter, :cm_flat].set(b2k[0])                               # b2 via carrier row

    w4f = jnp.zeros((cm_p, out_dim), jnp.float32)
    w4f = w4f.at[:cm_flat, :].set(w4e)

    return dict(
        w_in=w_in.astype(compute_dtype),
        w2=w2f.astype(compute_dtype),
        w4=w4f.astype(compute_dtype),
        b4=b4.astype(jnp.float32),
    )


# ----------------------------------------------------------------------------- forward
@partial(jax.jit, static_argnames=("block_b",))
def hnet_forward(q, v, prepped, *, block_b=512):
    """Fused HNet forward.  `prepped` comes from prepare_params (cached)."""
    B, q_in = q.shape
    v_in = v.shape[1]
    w_in, w2, w4, b4 = prepped["w_in"], prepped["w2"], prepped["w4"], prepped["b4"]
    out_dim = w4.shape[1]
    d_p = w_in.shape[0]
    assert d_p == _round_up(q_in + v_in + 1, 8), "prepped params do not match q/v dims"
    cdt = w_in.dtype

    # Batch tiling: >= 2 "parallel" tiles (v7x dual TensorCore) while
    # minimizing dead rows; block_b caps the tile for large B.
    if B <= 8:
        n_tiles, bt = 1, 8
    else:
        n_tiles = max(2, -(-B // block_b))
        bt = _round_up(-(-B // n_tiles), 8)
    Bp = n_tiles * bt

    # x = [q | v | 1 | 0-pad]; padded batch rows are zeros (sliced off below).
    ones = jnp.ones((B, 1), cdt)
    x = jnp.concatenate([q.astype(cdt), v.astype(cdt), ones], axis=1)
    x = jnp.pad(x, ((0, Bp - B), (0, d_p - (q_in + v_in + 1))))

    # NOTE: constant index_maps keep the (tiny) weights VMEM-resident across
    # the grid; activation/output tiles stream with double-buffered DMA.
    out = pl.pallas_call(
        hnet_kernel,
        out_shape=jax.ShapeDtypeStruct((Bp, out_dim), jnp.float32),
        grid=(n_tiles,),
        in_specs=[
            pl.BlockSpec((bt, d_p), lambda i: (i, 0)),     # activations stream
            pl.BlockSpec(w_in.shape, lambda i: (0, 0)),    # weights resident
            pl.BlockSpec(w2.shape, lambda i: (0, 0)),
            pl.BlockSpec(w4.shape, lambda i: (0, 0)),
            pl.BlockSpec(b4.shape, lambda i: (0, 0)),
        ],
        out_specs=pl.BlockSpec((bt, out_dim), lambda i: (i, 0)),
        compiler_params=pltpu.CompilerParams(
            dimension_semantics=("parallel",)),
    )(x, w_in, w2, w4, b4)

    return out[:B]


# ----------------------------------------------------------------------------- init / reference
def init_params(key, q_in_dim, inter_control_dim, cms, v_in_dim, out_dim):
    """Deterministic nn.Linear-style init: U(-1/sqrt(fan_in), 1/sqrt(fan_in)).
    Weights stored as (in_features, out_features); biases as (1, out_features)."""
    ks = jax.random.split(key, 8)

    def lin(kw, kb, fan_in, fan_out):
        bound = 1.0 / math.sqrt(fan_in)
        w = jax.random.uniform(kw, (fan_in, fan_out), jnp.float32, -bound, bound)
        b = jax.random.uniform(kb, (1, fan_out), jnp.float32, -bound, bound)
        return w, b

    w1, b1 = lin(ks[0], ks[1], q_in_dim, inter_control_dim)
    w2, b2 = lin(ks[2], ks[3], inter_control_dim, cms * cms)
    w3, b3 = lin(ks[4], ks[5], v_in_dim, cms)
    w4, b4 = lin(ks[6], ks[7], cms, out_dim)
    return dict(w1=w1, b1=b1, w2=w2, b2=b2, w3=w3, b3=b3, w4=w4, b4=b4)


def hnet_reference(q, v, params, cms):
    """Pure-JAX reference mirroring the PyTorch forward."""
    h = jnp.maximum(q @ params["w1"] + params["b1"], 0.0)
    cm = (h @ params["w2"] + params["b2"]).reshape(q.shape[0], cms, cms)
    left = jnp.maximum(v @ params["w3"] + params["b3"], 0.0)
    mixed = jnp.einsum("bj,bjk->bk", left, cm)
    return jnp.maximum(mixed @ params["w4"] + params["b4"], 0.0)


# ----------------------------------------------------------------------------- test
if __name__ == "__main__":
    # control_dims = (q_in_dim, inter_control_dim, control_mat_size)
    # main_dims    = (v_in_dim, out_dim)
    B = 200                                   # non-multiple of tile: exercises padding
    q_in_dim, inter_control_dim, cms = 32, 32, 16
    v_in_dim, out_dim = 32, 32

    key = jax.random.PRNGKey(0)
    kq, kv, kp = jax.random.split(key, 3)
    q = jax.random.normal(kq, (B, q_in_dim), jnp.float32)
    v = jax.random.normal(kv, (B, v_in_dim), jnp.float32)
    params = init_params(kp, q_in_dim, inter_control_dim, cms, v_in_dim, out_dim)

    ref = hnet_reference(q, v, params, cms)

    # Default bf16 matmul-operand path (f32 accumulation / elementwise).
    # Weights are prepped ONCE and reused for every forward call.
    prepped_bf16 = prepare_params(params, cms)
    out_bf16 = jax.block_until_ready(hnet_forward(q, v, prepped_bf16))   # 2 tiles of 104
    assert out_bf16.shape == (B, out_dim)
    assert jnp.allclose(out_bf16, ref, atol=5e-2, rtol=5e-2), "bf16 Pallas output mismatch"

    # Exact-f32 operand path.
    prepped_f32 = prepare_params(params, cms, compute_dtype=jnp.float32)
    out_f32 = jax.block_until_ready(hnet_forward(q, v, prepped_f32))
    assert jnp.allclose(out_f32, ref, atol=1e-3, rtol=1e-3), "f32 Pallas output mismatch"

    # Smaller block_b -> 4 "parallel" tiles of 56 rows (exercises tile selection).
    out_f32_4 = jax.block_until_ready(hnet_forward(q, v, prepped_f32, block_b=64))
    assert jnp.allclose(out_f32_4, ref, atol=1e-3, rtol=1e-3), "tiled Pallas output mismatch"

    print("KERNEL_OK")
</pallas_src>

<mosaic_0001>
module attributes {stable_mosaic.version = 11 : i64} {
  func.func @hnet_kernel(%arg0: i32, %arg1: memref<104x72xbf16, #tpu.memory_space<vmem>>, %arg2: memref<72x384xbf16, #tpu.memory_space<vmem>>, %arg3: memref<128x256xbf16, #tpu.memory_space<vmem>>, %arg4: memref<256x32xbf16, #tpu.memory_space<vmem>>, %arg5: memref<1x32xf32, #tpu.memory_space<vmem>>, %arg6: memref<104x32xf32, #tpu.memory_space<vmem>>) attributes {dimension_semantics = [#tpu.dimension_semantics<parallel>], iteration_bounds = array<i64: 2>, scalar_prefetch = 0 : i64, scratch_operands = 0 : i64, tpu.core_type = #tpu.core_type<tc>, window_params = [{transform_indices = @transform_0, window_bounds = array<i64: 104, 72>}, {pipeline_mode = #tpu.pipeline_mode<synchronous>, transform_indices = @transform_1, window_bounds = array<i64: 72, 384>}, {pipeline_mode = #tpu.pipeline_mode<synchronous>, transform_indices = @transform_2, window_bounds = array<i64: 128, 256>}, {pipeline_mode = #tpu.pipeline_mode<synchronous>, transform_indices = @transform_3, window_bounds = array<i64: 256, 32>}, {pipeline_mode = #tpu.pipeline_mode<synchronous>, transform_indices = @transform_4, window_bounds = array<i64: 1, 32>}, {transform_indices = @transform_5, window_bounds = array<i64: 104, 32>}]} {
    %c0 = arith.constant 0 : index
    %c0_0 = arith.constant 0 : index
    %0 = vector.load %arg1[%c0, %c0_0] : memref<104x72xbf16, #tpu.memory_space<vmem>>, vector<104x72xbf16>
    %c0_1 = arith.constant 0 : index
    %c0_2 = arith.constant 0 : index
    %1 = vector.load %arg2[%c0_1, %c0_2] : memref<72x384xbf16, #tpu.memory_space<vmem>>, vector<72x384xbf16>
    %cst = arith.constant dense<0.000000e+00> : vector<104x384xf32>
    %2 = tpu.matmul %0, %1, %cst {dimension_numbers = #tpu.dot_dimension_numbers<[1], [0], [0], [1], [0, 0, 1, 1], [], []>} : vector<104x72xbf16>, vector<72x384xbf16>, vector<104x384xf32> -> vector<104x384xf32>
    %cst_3 = arith.constant 0.000000e+00 : f32
    %3 = vector.broadcast %cst_3 : f32 to vector<104x384xf32>
    %4 = arith.maximumf %2, %3 : vector<104x384xf32>
    %5 = vector.extract_strided_slice %4 {offsets = [0, 0], sizes = [104, 128], strides = [1, 1]} : vector<104x384xf32> to vector<104x128xf32>
    %6 = vector.extract_strided_slice %4 {offsets = [0, 128], sizes = [104, 256], strides = [1, 1]} : vector<104x384xf32> to vector<104x256xf32>
    %7 = arith.truncf %5 : vector<104x128xf32> to vector<104x128xbf16>
    %c0_4 = arith.constant 0 : index
    %c0_5 = arith.constant 0 : index
    %8 = vector.load %arg3[%c0_4, %c0_5] : memref<128x256xbf16, #tpu.memory_space<vmem>>, vector<128x256xbf16>
    %cst_6 = arith.constant dense<0.000000e+00> : vector<104x256xf32>
    %9 = tpu.matmul %7, %8, %cst_6 {dimension_numbers = #tpu.dot_dimension_numbers<[1], [0], [0], [1], [0, 0, 1, 1], [], []>} : vector<104x128xbf16>, vector<128x256xbf16>, vector<104x256xf32> -> vector<104x256xf32>
    %10 = arith.mulf %6, %9 : vector<104x256xf32>
    %11 = arith.truncf %10 : vector<104x256xf32> to vector<104x256xbf16>
    %c0_7 = arith.constant 0 : index
    %c0_8 = arith.constant 0 : index
    %12 = vector.load %arg4[%c0_7, %c0_8] : memref<256x32xbf16, #tpu.memory_space<vmem>>, vector<256x32xbf16>
    %cst_9 = arith.constant dense<0.000000e+00> : vector<104x32xf32>
    %13 = tpu.matmul %11, %12, %cst_9 {dimension_numbers = #tpu.dot_dimension_numbers<[1], [0], [0], [1], [0, 0, 1, 1], [], []>} : vector<104x256xbf16>, vector<256x32xbf16>, vector<104x32xf32> -> vector<104x32xf32>
    %c0_10 = arith.constant 0 : index
    %c0_11 = arith.constant 0 : index
    %14 = vector.load %arg5[%c0_10, %c0_11] : memref<1x32xf32, #tpu.memory_space<vmem>>, vector<1x32xf32>
    %15 = vector.broadcast %14 : vector<1x32xf32> to vector<104x32xf32>
    %16 = arith.addf %13, %15 : vector<104x32xf32>
    %cst_12 = arith.constant 0.000000e+00 : f32
    %17 = vector.broadcast %cst_12 : f32 to vector<104x32xf32>
    %18 = arith.maximumf %16, %17 : vector<104x32xf32>
    %c0_13 = arith.constant 0 : index
    %c0_14 = arith.constant 0 : index
    %19 = vector.load %arg6[%c0_13, %c0_14] : memref<104x32xf32, #tpu.memory_space<vmem>>, vector<104x32xf32>
    tpu.vector_store %arg6[%c0_13, %c0_14], %18 {strides = array<i32>} : memref<104x32xf32, #tpu.memory_space<vmem>>, vector<104x32xf32>,
    return
  }
  func.func @transform_0(%arg0: i32) -> (i32, i32) {
    %c0_i32 = arith.constant 0 : i32
    %c0_i32_0 = arith.constant 0 : i32
    return %arg0, %c0_i32 : i32, i32
  }
  func.func @transform_1(%arg0: i32) -> (i32, i32) {
    %c0_i32 = arith.constant 0 : i32
    %c0_i32_0 = arith.constant 0 : i32
    %c0_i32_1 = arith.constant 0 : i32
    return %c0_i32, %c0_i32_0 : i32, i32
  }
  func.func @transform_2(%arg0: i32) -> (i32, i32) {
    %c0_i32 = arith.constant 0 : i32
    %c0_i32_0 = arith.constant 0 : i32
    %c0_i32_1 = arith.constant 0 : i32
    return %c0_i32, %c0_i32_0 : i32, i32
  }
  func.func @transform_3(%arg0: i32) -> (i32, i32) {
    %c0_i32 = arith.constant 0 : i32
    %c0_i32_0 = arith.constant 0 : i32
    %c0_i32_1 = arith.constant 0 : i32
    return %c0_i32, %c0_i32_0 : i32, i32
  }
  func.func @transform_4(%arg0: i32) -> (i32, i32) {
    %c0_i32 = arith.constant 0 : i32
    %c0_i32_0 = arith.constant 0 : i32
    %c0_i32_1 = arith.constant 0 : i32
    return %c0_i32, %c0_i32_0 : i32, i32
  }
  func.func @transform_5(%arg0: i32) -> (i32, i32) {
    %c0_i32 = arith.constant 0 : i32
    %c0_i32_0 = arith.constant 0 : i32
    return %arg0, %c0_i32 : i32, i32
  }
}

</mosaic_0001>

<llo_original>
// kernel: hnet_forward.1
$region0: #{hnet_forward.1}
  #allocation0 [shape = 'u32[]', space=smem, size = 0x4, offset = 0x4, fixed_abs, tag = 'smem constant byte address 0x4 - core index']
  #allocation1 [shape = 'u32[144,128]{1,0:T(1,128)}', space=vmem, size = 0x12000, scoped, tag = 'internal scratch']
  %s0 = inlined_call_operand.vmem [shape: bf16[208,72], index: 0, kind: input, shape index: {}]
  %s1 = inlined_call_operand.vmem [shape: bf16[72,384], index: 1, kind: input, shape index: {}]
  %s2 = inlined_call_operand.vmem [shape: bf16[128,256], index: 2, kind: input, shape index: {}]
  %s3 = inlined_call_operand.vmem [shape: bf16[256,32], index: 3, kind: input, shape index: {}]
  %s4 = inlined_call_operand.vmem [shape: f32[1,32], index: 4, kind: input, shape index: {}]
  %s5 = inlined_call_operand.vmem [shape: f32[208,32], index: 5, kind: output, shape index: {}]
  %s6 = sld [smem:[#allocation0]]
  $region53: #{hnet_forward.1} parent=0
    _
  %s8 = ssub.s32 1, %s6
  %s9 = scalar_select 0, %s8, %s6
  loop: start=0, step=1, limit=4
  $region2: #{hnet_forward.1} parent=0 // loop_pre_header
    _
  $region3: #{hnet_forward.1} parent=0 // loop_header
    %s11 = sphi 0, %s15
    %p12 = scmp.ge.s32.totalorder %s11, 4
    %s21 = sphi 0, %s23
    %s24 = sphi 0, %s21
    %s25 = sphi 0, %s24
    %s41 = sphi 0, %s25
    %s45 = sphi 0, %s45
    %s47 = sphi 0, %s45
    %s48 = sphi 0, %s47
    %s62 = sphi 0, %s48
    %s66 = sphi 0, %s66
    %s68 = sphi 0, %s66
    %s69 = sphi 0, %s68
    %s83 = sphi 0, %s69
    %s87 = sphi 0, %s87
    %s89 = sphi 0, %s87
    %s90 = sphi 0, %s89
    %s104 = sphi 0, %s90
    %s108 = sphi 0, %s108
    %s110 = sphi 0, %s108
    %s111 = sphi 0, %s110
    %s125 = sphi 0, %s111
    %s131 = sphi 0, %s133
    %s134 = sphi 0, %s131
    %s135 = sphi 0, %s134
    %s151 = sphi 0, %s135
  $region4: #{hnet_forward.1} parent=0 // loop_header_branch
    %14 = sbr.rel (%p12) target = $region8
  $region5: #{hnet_forward.1} parent=0 // loop_body
    %s16 = ssub.s32 %s11, 1
    %s17 = ssub.s32 %s11, 2
    %s18 = sadd.s32 %s11, 1
    %s19 = ssub.s32 %s11, %s18
    %p20 = scmp.eq.s32.totalorder %s19, 0
    %s22 = sadd.s32 %s21, 1
    %s23 = scalar_select %p20, %s21, %s22
    %p26 = pneg %p20
    %p27 = scmp.eq.s32.totalorder %s11, 1
    %p28 = por %p26, %p27
    %p29 = scmp.ne.s32.totalorder %s21, %s24
    %p30 = scmp.eq.s32.totalorder %s11, 0
    %p31 = por %p29, %p30
    %p32 = scmp.ne.s32.totalorder %s21, %s24
    %p33 = scmp.eq.s32.totalorder %s16, 1
    %p34 = por %p32, %p33
    %p35 = scmp.ne.s32.totalorder %s24, %s25
    %p36 = scmp.eq.s32.totalorder %s16, 0
    %p37 = por %p35, %p36
    %p38 = scmp.ne.s32.totalorder %s24, %s25
    %p39 = scmp.eq.s32.totalorder %s17, 1
    %p40 = por %p38, %p39
    %p42 = scmp.ne.s32.totalorder %s25, %s41
    %p43 = scmp.eq.s32.totalorder %s17, 0
    %p44 = por %p42, %p43
    %s46 = sadd.s32 %s45, 1
    %p49 = scmp.eq.s32.totalorder %s11, 1
    %p50 = scmp.ne.s32.totalorder %s45, %s47
    %p51 = scmp.eq.s32.totalorder %s11, 0
    %p52 = por %p50, %p51
    %p53 = scmp.ne.s32.totalorder %s45, %s47
    %p54 = scmp.eq.s32.totalorder %s16, 1
    %p55 = por %p53, %p54
    %p56 = scmp.ne.s32.totalorder %s47, %s48
    %p57 = scmp.eq.s32.totalorder %s16, 0
    %p58 = por %p56, %p57
    %p59 = scmp.ne.s32.totalorder %s47, %s48
    %p60 = scmp.eq.s32.totalorder %s17, 1
    %p61 = por %p59, %p60
    %p63 = scmp.ne.s32.totalorder %s48, %s62
    %p64 = scmp.eq.s32.totalorder %s17, 0
    %p65 = por %p63, %p64
    %s67 = sadd.s32 %s66, 1
    %p70 = scmp.eq.s32.totalorder %s11, 1
    %p71 = scmp.ne.s32.totalorder %s66, %s68
    %p72 = scmp.eq.s32.totalorder %s11, 0
    %p73 = por %p71, %p72
    %p74 = scmp.ne.s32.totalorder %s66, %s68
    %p75 = scmp.eq.s32.totalorder %s16, 1
    %p76 = por %p74, %p75
    %p77 = scmp.ne.s32.totalorder %s68, %s69
    %p78 = scmp.eq.s32.totalorder %s16, 0
    %p79 = por %p77, %p78
    %p80 = scmp.ne.s32.totalorder %s68, %s69
    %p81 = scmp.eq.s32.totalorder %s17, 1
    %p82 = por %p80, %p81
    %p84 = scmp.ne.s32.totalorder %s69, %s83
    %p85 = scmp.eq.s32.totalorder %s17, 0
    %p86 = por %p84, %p85
    %s88 = sadd.s32 %s87, 1
    %p91 = scmp.eq.s32.totalorder %s11, 1
    %p92 = scmp.ne.s32.totalorder %s87, %s89
    %p93 = scmp.eq.s32.totalorder %s11, 0
    %p94 = por %p92, %p93
    %p95 = scmp.ne.s32.totalorder %s87, %s89
    %p96 = scmp.eq.s32.totalorder %s16, 1
    %p97 = por %p95, %p96
    %p98 = scmp.ne.s32.totalorder %s89, %s90
    %p99 = scmp.eq.s32.totalorder %s16, 0
    %p100 = por %p98, %p99
    %p101 = scmp.ne.s32.totalorder %s89, %s90
    %p102 = scmp.eq.s32.totalorder %s17, 1
    %p103 = por %p101, %p102
    %p105 = scmp.ne.s32.totalorder %s90, %s104
    %p106 = scmp.eq.s32.totalorder %s17, 0
    %p107 = por %p105, %p106
    %s109 = sadd.s32 %s108, 1
    %p112 = scmp.eq.s32.totalorder %s11, 1
    %p113 = scmp.ne.s32.totalorder %s108, %s110
    %p114 = scmp.eq.s32.totalorder %s11, 0
    %p115 = por %p113, %p114
    %p116 = scmp.ne.s32.totalorder %s108, %s110
    %p117 = scmp.eq.s32.totalorder %s16, 1
    %p118 = por %p116, %p117
    %p119 = scmp.ne.s32.totalorder %s110, %s111
    %p120 = scmp.eq.s32.totalorder %s16, 0
    %p121 = por %p119, %p120
    %p122 = scmp.ne.s32.totalorder %s110, %s111
    %p123 = scmp.eq.s32.totalorder %s17, 1
    %p124 = por %p122, %p123
    %p126 = scmp.ne.s32.totalorder %s111, %s125
    %p127 = scmp.eq.s32.totalorder %s17, 0
    %p128 = por %p126, %p127
    %s129 = ssub.s32 %s11, %s18
    %p130 = scmp.eq.s32.totalorder %s129, 0
    %s132 = sadd.s32 %s131, 1
    %s133 = scalar_select %p130, %s131, %s132
    %p136 = pneg %p130
    %p137 = scmp.eq.s32.totalorder %s11, 1
    %p138 = por %p136, %p137
    %p139 = scmp.ne.s32.totalorder %s131, %s134
    %p140 = scmp.eq.s32.totalorder %s11, 0
    %p141 = por %p139, %p140
    %p142 = scmp.ne.s32.totalorder %s131, %s134
    %p143 = scmp.eq.s32.totalorder %s16, 1
    %p144 = por %p142, %p143
    %p145 = scmp.ne.s32.totalorder %s134, %s135
    %p146 = scmp.eq.s32.totalorder %s16, 0
    %p147 = por %p145, %p146
    %p148 = scmp.ne.s32.totalorder %s134, %s135
    %p149 = scmp.eq.s32.totalorder %s17, 1
    %p150 = por %p148, %p149
    %p152 = scmp.ne.s32.totalorder %s135, %s151
    %p153 = scmp.eq.s32.totalorder %s17, 0
    %p154 = por %p152, %p153
    %p155 = scmp.le.s32.totalorder 1, %s11
    %p156 = scmp.lt.s32.totalorder %s11, 3
    %p157 = pnand %p155, %p156
    %p158 = pneg %p157
    // Predicated region
    $region9: #{hnet_forward.1} parent=5 // pred_check
      _
    $region10: #{hnet_forward.1} parent=5 // pred_check_branch
      %160 = sbr.rel (%p157) target = $region12
    $region11: #{hnet_forward.1} parent=5 // pred_region
      %s161 = ssub.s32 %s11, 1
      // Predicated region
      $region13: #{hnet_forward.1} parent=11 // pred_check
        %p162 = pneg %p58
      $region14: #{hnet_forward.1} parent=11 // pred_check_branch
        %164 = sbr.rel (%p162) target = $region16
      $region15: #{hnet_forward.1} parent=11 // pred_region
        _
      $region16: #{hnet_forward.1} parent=11 // pred_fallthru
        _
      // Predicated region
      $region17: #{hnet_forward.1} parent=11 // pred_check
        %p165 = pneg %p79
      $region18: #{hnet_forward.1} parent=11 // pred_check_branch
        %167 = sbr.rel (%p165) target = $region20
      $region19: #{hnet_forward.1} parent=11 // pred_region
        _
      $region20: #{hnet_forward.1} parent=11 // pred_fallthru
        _
      // Predicated region
      $region21: #{hnet_forward.1} parent=11 // pred_check
        %p168 = pneg %p100
      $region22: #{hnet_forward.1} parent=11 // pred_check_branch
        %170 = sbr.rel (%p168) target = $region24
      $region23: #{hnet_forward.1} parent=11 // pred_region
        _
      $region24: #{hnet_forward.1} parent=11 // pred_fallthru
        _
      // Predicated region
      $region25: #{hnet_forward.1} parent=11 // pred_check
        %p171 = pneg %p121
      $region26: #{hnet_forward.1} parent=11 // pred_check_branch
        %173 = sbr.rel (%p171) target = $region28
      $region27: #{hnet_forward.1} parent=11 // pred_region
        _
      $region28: #{hnet_forward.1} parent=11 // pred_fallthru
        _
    $region12: #{hnet_forward.1} parent=5 // pred_fallthru
      _
    %p174 = scmp.lt.s32.totalorder %s11, 2
    // Predicated region
    $region29: #{hnet_forward.1} parent=5 // pred_check
      %p175 = pneg %p174
    $region30: #{hnet_forward.1} parent=5 // pred_check_branch
      %177 = sbr.rel (%p175) target = $region32
    $region31: #{hnet_forward.1} parent=5 // pred_region
      // Predicated region
      $region33: #{hnet_forward.1} parent=31 // pred_check
        %p178 = pneg %p31
      $region34: #{hnet_forward.1} parent=31 // pred_check_branch
        %180 = sbr.rel (%p178) target = $region36
      $region35: #{hnet_forward.1} parent=31 // pred_region
        %s181 = smul.u32 13, %s11
        %p182 = scmp.lt.s32.totalorder %s181, 25
        %s183 = scalar_select %p182, %s181, 25
        %s184 = smul.addr %s183, 4
        %s185 = scalar_lea.vmem %s0, %s184
        %s186 = smul.u32 13, %s11
      $region36: #{hnet_forward.1} parent=31 // pred_fallthru
        _
    $region32: #{hnet_forward.1} parent=5 // pred_fallthru
      _
    %p187 = scmp.le.s32.totalorder 1, %s11
    %p188 = scmp.lt.s32.totalorder %s11, 3
    %p189 = pnand %p187, %p188
    %p190 = pneg %p189
    // Predicated region
    $region37: #{hnet_forward.1} parent=5 // pred_check
      _
    $region38: #{hnet_forward.1} parent=5 // pred_check_branch
      %192 = sbr.rel (%p189) target = $region40
    $region39: #{hnet_forward.1} parent=5 // pred_region
      %s193 = ssub.s32 %s11, 1
      %s194 = smul.u32 13, %s16
      %p195 = scmp.lt.s32.totalorder %s194, 25
      %s196 = scalar_select %p195, %s194, 25
      %s197 = smul.addr %s196, 4
      %s198 = scalar_lea.vmem %s0, %s197
      %p199 = pneg %p37
      %p200 = pneg %p34
      %p201 = pneg %p58
      %p202 = pneg %p55
      %p203 = pneg %p79
      %p204 = pneg %p76
      %p205 = pneg %p100
      %p206 = pneg %p97
      %p207 = pneg %p121
      %p208 = pneg %p118
      %p209 = pneg %p147
      %p210 = pneg %p144
      %s211 = smul.u32 13, %s16
      %p212 = scmp.lt.s32.totalorder %s211, 25
      %s213 = scalar_select %p212, %s211, 25
      %s214 = smul.addr %s213, 8
      %s215 = scalar_lea.vmem %s5, %s214
      %s216 = smul.u32 13, %s16
      %p217 = scmp.lt.s32.totalorder %s216, 25
      %s218 = scalar_select %p217, %s216, 25
      %s219 = smul.addr %s218, 4
      %s220 = scalar_lea.vmem %s0, %s219
      %s221 = smul.u32 13, %s16
      %s222 = smul.u32 13, %s16
      %p223 = scmp.lt.s32.totalorder %s222, 25
      %s224 = scalar_select %p223, %s222, 25
      %s225 = smul.addr %s224, 8
      %s226 = scalar_lea.vmem %s5, %s225
      %s227 = smul.u32 13, %s16
      %v229 = vld [vmem:[%s220] sm:$0xf]
      %v230 = vld [vmem:[%s220 + $0x4] sm:$0xf]
      %v231 = vld [vmem:[%s220 + $0x8] sm:$0xf]
      %v232 = vld [vmem:[%s220 + $0xc] sm:$0xf]
      %v233 = vld [vmem:[%s220 + $0x10] sm:$0xf]
      %v234 = vld [vmem:[%s220 + $0x14] sm:$0xf]
      %v235 = vld [vmem:[%s220 + $0x18] sm:$0xf]
      %v236 = vld [vmem:[%s220 + $0x1c] sm:$0xf]
      %v237 = vld [vmem:[%s220 + $0x20] sm:$0xf]
      %v238 = vld [vmem:[%s220 + $0x24] sm:$0xf]
      %v239 = vld [vmem:[%s220 + $0x28] sm:$0xf]
      %v240 = vld [vmem:[%s220 + $0x2c] sm:$0xf]
      %v241 = vld [vmem:[%s220 + $0x30] sm:$0xf]
      %v242 = vld [vmem:[%s1] sm:$0xff]
      %v243 = vld [vmem:[%s1 + $0x8] sm:$0xf]
      %v244 = vld [vmem:[%s1 + $0xc] sm:$0xff]
      %v245 = vld [vmem:[%s1 + $0x14] sm:$0xf]
      %v246 = vld [vmem:[%s1 + $0x18] sm:$0xff]
      %v247 = vld [vmem:[%s1 + $0x20] sm:$0xf]
      %v248 = vld [vmem:[%s1 + $0x24] sm:$0xff]
      %v249 = vld [vmem:[%s1 + $0x2c] sm:$0xf]
      %v250 = vld [vmem:[%s1 + $0x30] sm:$0xff]
      %v251 = vld [vmem:[%s1 + $0x38] sm:$0xf]
      %v252 = vld [vmem:[%s1 + $0x3c] sm:$0xff]
      %v253 = vld [vmem:[%s1 + $0x44] sm:$0xf]
      %v254 = vld [vmem:[%s1 + $0x48] sm:$0xff]
      %v255 = vld [vmem:[%s1 + $0x50] sm:$0xf]
      %v256 = vld [vmem:[%s1 + $0x54] sm:$0xff]
      %v257 = vld [vmem:[%s1 + $0x5c] sm:$0xf]
      %v258 = vld [vmem:[%s1 + $0x60] sm:$0xff]
      %v259 = vld [vmem:[%s1 + $0x68] sm:$0xf]
      %v273 = vunpack.c.l.b16 %v229
      %v274 = vunpack.c.l.b16 %v230
      %v275 = vunpack.c.l.b16 %v231
      %v276 = vunpack.c.l.b16 %v232
      %v277 = vunpack.c.l.b16 %v233
      %v278 = vunpack.c.l.b16 %v234
      %v279 = vunpack.c.l.b16 %v235
      %v280 = vunpack.c.l.b16 %v236
      %v281 = vunpack.c.l.b16 %v237
      %v282 = vunpack.c.l.b16 %v238
      %v283 = vunpack.c.l.b16 %v239
      %v284 = vunpack.c.l.b16 %v240
      %v285 = vunpack.c.l.b16 %v241
      %v286 = vpack.c.b16 %v274, %v273
      %v287 = vpack.c.b16 %v276, %v275
      %v288 = vpack.c.b16 %v278, %v277
      %v289 = vpack.c.b16 %v280, %v279
      %v290 = vpack.c.b16 %v282, %v281
      %v291 = vpack.c.b16 %v284, %v283
      %v292 = vpack.c.b16 %v285, %v285
      %v311 = vunpack.c.l.b16 %v242
      %v312 = vunpack.c.h.b16 %v242
      %v313 = vunpack.c.l.b16 %v243
      %v314 = vunpack.c.l.b16 %v244
      %v315 = vunpack.c.h.b16 %v244
      %v316 = vunpack.c.l.b16 %v245
      %v317 = vunpack.c.l.b16 %v246
      %v318 = vunpack.c.h.b16 %v246
      %v319 = vunpack.c.l.b16 %v247
      %v320 = vunpack.c.l.b16 %v248
      %v321 = vunpack.c.h.b16 %v248
      %v322 = vunpack.c.l.b16 %v249
      %v323 = vunpack.c.l.b16 %v250
      %v324 = vunpack.c.h.b16 %v250
      %v325 = vunpack.c.l.b16 %v251
      %v326 = vunpack.c.l.b16 %v252
      %v327 = vunpack.c.h.b16 %v252
      %v328 = vunpack.c.l.b16 %v253
      %v329 = vunpack.c.l.b16 %v254
      %v330 = vunpack.c.h.b16 %v254
      %v331 = vunpack.c.l.b16 %v255
      %v332 = vunpack.c.l.b16 %v256
      %v333 = vunpack.c.h.b16 %v256
      %v334 = vunpack.c.l.b16 %v257
      %v335 = vunpack.c.l.b16 %v258
      %v336 = vunpack.c.h.b16 %v258
      %v337 = vunpack.c.l.b16 %v259
      %v338 = vpack.c.b16 %v314, %v311
      %v339 = vpack.c.b16 %v315, %v312
      %v340 = vpack.c.b16 %v316, %v313
      %v341 = vpack.c.b16 %v320, %v317
      %v342 = vpack.c.b16 %v321, %v318
      %v343 = vpack.c.b16 %v322, %v319
      %v344 = vpack.c.b16 %v326, %v323
      %v345 = vpack.c.b16 %v327, %v324
      %v346 = vpack.c.b16 %v328, %v325
      %v347 = vpack.c.b16 %v332, %v329
      %v348 = vpack.c.b16 %v333, %v330
      %v349 = vpack.c.b16 %v334, %v331
      %v350 = vpack.c.b16 %v335, %v335
      %v351 = vpack.c.b16 %v336, %v336
      %v352 = vpack.c.b16 %v337, %v337
      %vm365 = vcmask 588800
      %v367 = vsel %vm365, %v286, 0
      %v370 = vsel %vm365, %v287, 0
      %v373 = vsel %vm365, %v288, 0
      %v376 = vsel %vm365, %v289, 0
      %v379 = vsel %vm365, %v290, 0
      %v382 = vsel %vm365, %v291, 0
      %v385 = vsel %vm365, %v292, 0
      %vm387 = vcmask 1043456
      %v389 = vsel %vm387, %v350, 0
      %v392 = vsel %vm387, %v351, 0
      %v395 = vsel %vm387, %v352, 0
      %397 = vmatprep.subr.bf16.mxu0 %v339
      %398 = vmatpush1.bf16.msra.mxu0 %v338
      %399 = vmatprep.subr.bf16.mxu0 %v342
      %400 = vmatpush1.bf16.msra.mxu0 %v341
      %401 = vmatprep.subr.bf16.mxu0 %v345
      %402 = vmatpush1.bf16.msra.mxu0 %v344
      %403 = vmatprep.subr.bf16.mxu0 %v348
      %404 = vmatpush1.bf16.msra.mxu0 %v347
      %405 = vmatprep.subr.bf16.mxu0 %v392
      %406 = vmatpush1.bf16.msra.mxu0 %v389
      %407 = vmatprep.subr.bf16.mxu0 0
      %408 = vmatpush1.bf16.msra.mxu0 0
      %409 = vmatprep.subr.bf16.mxu0 0
      %410 = vmatpush1.bf16.msra.mxu0 0
      %411 = vmatprep.subr.bf16.mxu0 0
      %412 = vmatpush1.bf16.msra.mxu0 0
      %413 = vmatprep.subr.bf16.mxu0 0
      %414 = vmatpush1.bf16.msra.mxu0 0
      %415 = vmatprep.subr.bf16.mxu0 0
      %416 = vmatpush1.bf16.msra.mxu0 0
      %417 = vmatprep.subr.bf16.mxu0 0
      %418 = vmatpush1.bf16.msra.mxu0 0
      %419 = vmatprep.subr.bf16.mxu0 0
      %420 = vmatpush1.bf16.msra.mxu0 0
      %421 = vmatprep.subr.bf16.mxu0 0
      %422 = vmatpush1.bf16.msra.mxu0 0
      %423 = vmatprep.subr.bf16.mxu0 0
      %424 = vmatpush1.bf16.msra.mxu0 0
      %425 = vmatprep.subr.bf16.mxu0 0
      %426 = vmatpush1.bf16.msra.mxu0 0
      %427 = vmatprep.subr.bf16.mxu0 0
      %428 = vmatpush1.bf16.msra.mxu0 0
      %429 = vmatprep.mubr.bf16.mxu0 0
      %430 = vmatmul.mubr.bf16.gmra.mrb[0].mxu0 %v367
      %v431 = vpop.f32.mrb[0].mxu0
      %v432 = vadd.f32 0.0, %v431
      %v433 = vpop.f32.mrb[0].mxu0
      %v434 = vadd.f32 0.0, %v433
      %v435 = vpop.f32.mrb[0].mxu0
      %v436 = vadd.f32 0.0, %v435
      %v437 = vpop.f32.mrb[0].mxu0
      %v438 = vadd.f32 0.0, %v437
      %439 = vmatprep.mubr.bf16.mxu0 0
      %440 = vmatmul.mubr.bf16.gmra.mrb[0].mxu0 %v370
      %v441 = vpop.f32.mrb[0].mxu0
      %v442 = vadd.f32 0.0, %v441
      %v443 = vpop.f32.mrb[0].mxu0
      %v444 = vadd.f32 0.0, %v443
      %v445 = vpop.f32.mrb[0].mxu0
      %v446 = vadd.f32 0.0, %v445
      %v447 = vpop.f32.mrb[0].mxu0
      %v448 = vadd.f32 0.0, %v447
      %449 = vmatprep.mubr.bf16.mxu0 0
      %450 = vmatmul.mubr.bf16.gmra.mrb[0].mxu0 %v373
      %v451 = vpop.f32.mrb[0].mxu0
      %v452 = vadd.f32 0.0, %v451
      %v453 = vpop.f32.mrb[0].mxu0
      %v454 = vadd.f32 0.0, %v453
      %v455 = vpop.f32.mrb[0].mxu0
      %v456 = vadd.f32 0.0, %v455
      %v457 = vpop.f32.mrb[0].mxu0
      %v458 = vadd.f32 0.0, %v457
      %459 = vmatprep.mubr.bf16.mxu0 0
      %460 = vmatmul.mubr.bf16.gmra.mrb[0].mxu0 %v376
      %v461 = vpop.f32.mrb[0].mxu0
      %v462 = vadd.f32 0.0, %v461
      %v463 = vpop.f32.mrb[0].mxu0
      %v464 = vadd.f32 0.0, %v463
      %v465 = vpop.f32.mrb[0].mxu0
      %v466 = vadd.f32 0.0, %v465
      %v467 = vpop.f32.mrb[0].mxu0
      %v468 = vadd.f32 0.0, %v467
      %469 = vmatprep.mubr.bf16.mxu0 0
      %470 = vmatmul.mubr.bf16.gmra.mrb[0].mxu0 %v379
      %v471 = vpop.f32.mrb[0].mxu0
      %v472 = vadd.f32 0.0, %v471
      %v473 = vpop.f32.mrb[0].mxu0
      %v474 = vadd.f32 0.0, %v473
      %v475 = vpop.f32.mrb[0].mxu0
      %v476 = vadd.f32 0.0, %v475
      %v477 = vpop.f32.mrb[0].mxu0
      %v478 = vadd.f32 0.0, %v477
      %479 = vmatprep.mubr.bf16.mxu0 0
      %480 = vmatmul.mubr.bf16.gmra.mrb[0].mxu0 %v382
      %v481 = vpop.f32.mrb[0].mxu0
      %v482 = vadd.f32 0.0, %v481
      %v483 = vpop.f32.mrb[0].mxu0
      %v484 = vadd.f32 0.0, %v483
      %v485 = vpop.f32.mrb[0].mxu0
      %v486 = vadd.f32 0.0, %v485
      %v487 = vpop.f32.mrb[0].mxu0
      %v488 = vadd.f32 0.0, %v487
      %489 = vmatprep.mubr.bf16.mxu0 0
      %490 = vmatmul.mubr.bf16.gmra.mrb[0].mxu0 %v385
      %v491 = vpop.f32.mrb[0].mxu0
      %v492 = vadd.f32 0.0, %v491
      %v493 = vpop.f32.mrb[0].mxu0
      %v494 = vadd.f32 0.0, %v493
      %v495 = vpop.f32.mrb[0].mxu0
      %v496 = vpop.f32.mrb[0].mxu0
      %497 = vdwg.mxu0
      %498 = vmatprep.subr.bf16.mxu0 0
      %499 = vmatpush1.bf16.msra.mxu0 %v340
      %500 = vmatprep.subr.bf16.mxu0 0
      %501 = vmatpush1.bf16.msra.mxu0 %v343
      %502 = vmatprep.subr.bf16.mxu0 0
      %503 = vmatpush1.bf16.msra.mxu0 %v346
      %504 = vmatprep.subr.bf16.mxu0 0
      %505 = vmatpush1.bf16.msra.mxu0 %v349
      %506 = vmatprep.subr.bf16.mxu0 0
      %507 = vmatpush1.bf16.msra.mxu0 %v395
      %508 = vmatprep.subr.bf16.mxu0 0
      %509 = vmatpush1.bf16.msra.mxu0 0
      %510 = vmatprep.subr.bf16.mxu0 0
      %511 = vmatpush1.bf16.msra.mxu0 0
      %512 = vmatprep.subr.bf16.mxu0 0
      %513 = vmatpush1.bf16.msra.mxu0 0
      %514 = vmatprep.subr.bf16.mxu0 0
      %515 = vmatpush1.bf16.msra.mxu0 0
      %516 = vmatprep.subr.bf16.mxu0 0
      %517 = vmatpush1.bf16.msra.mxu0 0
      %518 = vmatprep.subr.bf16.mxu0 0
      %519 = vmatpush1.bf16.msra.mxu0 0
      %520 = vmatprep.subr.bf16.mxu0 0
      %521 = vmatpush1.bf16.msra.mxu0 0
      %522 = vmatprep.subr.bf16.mxu0 0
      %523 = vmatpush1.bf16.msra.mxu0 0
      %524 = vmatprep.subr.bf16.mxu0 0
      %525 = vmatpush1.bf16.msra.mxu0 0
      %526 = vmatprep.subr.bf16.mxu0 0
      %527 = vmatpush1.bf16.msra.mxu0 0
      %528 = vmatprep.subr.bf16.mxu0 0
      %529 = vmatpush1.bf16.msra.mxu0 0
      %530 = vmatprep.mubr.bf16.mxu0 0
      %531 = vmatmul.mubr.bf16.gmra.mrb[0].mxu0 %v367
      %v532 = vpop.f32.mrb[0].mxu0
      %v533 = vadd.f32 0.0, %v532
      %v534 = vpop.f32.mrb[0].mxu0
      %v535 = vpop.f32.mrb[0].mxu0
      %v536 = vadd.f32 0.0, %v535
      %v537 = vpop.f32.mrb[0].mxu0
      %538 = vmatprep.mubr.bf16.mxu0 0
      %539 = vmatmul.mubr.bf16.gmra.mrb[0].mxu0 %v370
      %v540 = vpop.f32.mrb[0].mxu0
      %v541 = vadd.f32 0.0, %v540
      %v542 = vpop.f32.mrb[0].mxu0
      %v543 = vpop.f32.mrb[0].mxu0
      %v544 = vadd.f32 0.0, %v543
      %v545 = vpop.f32.mrb[0].mxu0
      %546 = vmatprep.mubr.bf16.mxu0 0
      %547 = vmatmul.mubr.bf16.gmra.mrb[0].mxu0 %v373
      %v548 = vpop.f32.mrb[0].mxu0
      %v549 = vadd.f32 0.0, %v548
      %v550 = vpop.f32.mrb[0].mxu0
      %v551 = vpop.f32.mrb[0].mxu0
      %v552 = vadd.f32 0.0, %v551
      %v553 = vpop.f32.mrb[0].mxu0
      %554 = vmatprep.mubr.bf16.mxu0 0
      %555 = vmatmul.mubr.bf16.gmra.mrb[0].mxu0 %v376
      %v556 = vpop.f32.mrb[0].mxu0
      %v557 = vadd.f32 0.0, %v556
      %v558 = vpop.f32.mrb[0].mxu0
      %v559 = vpop.f32.mrb[0].mxu0
      %v560 = vadd.f32 0.0, %v559
      %v561 = vpop.f32.mrb[0].mxu0
      %562 = vmatprep.mubr.bf16.mxu0 0
      %563 = vmatmul.mubr.bf16.gmra.mrb[0].mxu0 %v379
      %v564 = vpop.f32.mrb[0].mxu0
      %v565 = vadd.f32 0.0, %v564
      %v566 = vpop.f32.mrb[0].mxu0
      %v567 = vpop.f32.mrb[0].mxu0
      %v568 = vadd.f32 0.0, %v567
      %v569 = vpop.f32.mrb[0].mxu0
      %570 = vmatprep.mubr.bf16.mxu0 0
      %571 = vmatmul.mubr.bf16.gmra.mrb[0].mxu0 %v382
      %v572 = vpop.f32.mrb[0].mxu0
      %v573 = vadd.f32 0.0, %v572
      %v574 = vpop.f32.mrb[0].mxu0
      %v575 = vpop.f32.mrb[0].mxu0
      %v576 = vadd.f32 0.0, %v575
      %v577 = vpop.f32.mrb[0].mxu0
      %578 = vmatprep.mubr.bf16.mxu0 0
      %579 = vmatmul.mubr.bf16.gmra.mrb[0].mxu0 %v385
      %v580 = vpop.f32.mrb[0].mxu0
      %v581 = vadd.f32 0.0, %v580
      %v582 = vpop.f32.mrb[0].mxu0
      %v583 = vpop.f32.mrb[0].mxu0
      %v584 = vpop.f32.mrb[0].mxu0
      %585 = vdwg.mxu0
      %v586 = vmax.f32 %v432, 0.0
      %v587 = vmax.f32 %v434, 0.0
      %v588 = vmax.f32 %v533, 0.0
      %v589 = vmax.f32 %v436, 0.0
      %v590 = vmax.f32 %v438, 0.0
      %v591 = vmax.f32 %v536, 0.0
      %v592 = vmax.f32 %v442, 0.0
      %v593 = vmax.f32 %v444, 0.0
      %v594 = vmax.f32 %v541, 0.0
      %v595 = vmax.f32 %v446, 0.0
      %v596 = vmax.f32 %v448, 0.0
      %v597 = vmax.f32 %v544, 0.0
      %v598 = vmax.f32 %v452, 0.0
      %v599 = vmax.f32 %v454, 0.0
      %v600 = vmax.f32 %v549, 0.0
      %v601 = vmax.f32 %v456, 0.0
      %v602 = vmax.f32 %v458, 0.0
      %v603 = vmax.f32 %v552, 0.0
      %v604 = vmax.f32 %v462, 0.0
      %v605 = vmax.f32 %v464, 0.0
      %v606 = vmax.f32 %v557, 0.0
      %v607 = vmax.f32 %v466, 0.0
      %v608 = vmax.f32 %v468, 0.0
      %v609 = vmax.f32 %v560, 0.0
      %v610 = vmax.f32 %v472, 0.0
      %v611 = vmax.f32 %v474, 0.0
      %v612 = vmax.f32 %v565, 0.0
      %v613 = vmax.f32 %v476, 0.0
      %v614 = vmax.f32 %v478, 0.0
      %v615 = vmax.f32 %v568, 0.0
      %v616 = vmax.f32 %v482, 0.0
      %v617 = vmax.f32 %v484, 0.0
      %v618 = vmax.f32 %v573, 0.0
      %v619 = vmax.f32 %v486, 0.0
      %v620 = vmax.f32 %v488, 0.0
      %v621 = vmax.f32 %v576, 0.0
      %v622 = vmax.f32 %v492, 0.0
      %v623 = vmax.f32 %v494, 0.0
      %v624 = vmax.f32 %v581, 0.0
      %v625 = vpack.c.bf16 %v589, %v586
      %v626 = vpack.c.bf16 %v595, %v592
      %v627 = vpack.c.bf16 %v601, %v598
      %v628 = vpack.c.bf16 %v607, %v604
      %v629 = vpack.c.bf16 %v613, %v610
      %v630 = vpack.c.bf16 %v619, %v616
      %v631 = vpack.c.bf16 %v622, %v622
      %v632 = vld [vmem:[%s2] sm:$0xff]
      %v633 = vld [vmem:[%s2 + $0x8] sm:$0xff]
      %v634 = vld [vmem:[%s2 + $0x10] sm:$0xff]
      %v635 = vld [vmem:[%s2 + $0x18] sm:$0xff]
      %v636 = vld [vmem:[%s2 + $0x20] sm:$0xff]
      %v637 = vld [vmem:[%s2 + $0x28] sm:$0xff]
      %v638 = vld [vmem:[%s2 + $0x30] sm:$0xff]
      %v639 = vld [vmem:[%s2 + $0x38] sm:$0xff]
      %v640 = vld [vmem:[%s2 + $0x40] sm:$0xff]
      %v641 = vld [vmem:[%s2 + $0x48] sm:$0xff]
      %v642 = vld [vmem:[%s2 + $0x50] sm:$0xff]
      %v643 = vld [vmem:[%s2 + $0x58] sm:$0xff]
      %v644 = vld [vmem:[%s2 + $0x60] sm:$0xff]
      %v645 = vld [vmem:[%s2 + $0x68] sm:$0xff]
      %v646 = vld [vmem:[%s2 + $0x70] sm:$0xff]
      %v647 = vld [vmem:[%s2 + $0x78] sm:$0xff]
      %v664 = vunpack.c.l.b16 %v632
      %v665 = vunpack.c.h.b16 %v632
      %v666 = vunpack.c.l.b16 %v633
      %v667 = vunpack.c.h.b16 %v633
      %v668 = vunpack.c.l.b16 %v634
      %v669 = vunpack.c.h.b16 %v634
      %v670 = vunpack.c.l.b16 %v635
      %v671 = vunpack.c.h.b16 %v635
      %v672 = vunpack.c.l.b16 %v636
      %v673 = vunpack.c.h.b16 %v636
      %v674 = vunpack.c.l.b16 %v637
      %v675 = vunpack.c.h.b16 %v637
      %v676 = vunpack.c.l.b16 %v638
      %v677 = vunpack.c.h.b16 %v638
      %v678 = vunpack.c.l.b16 %v639
      %v679 = vunpack.c.h.b16 %v639
      %v680 = vunpack.c.l.b16 %v640
      %v681 = vunpack.c.h.b16 %v640
      %v682 = vunpack.c.l.b16 %v641
      %v683 = vunpack.c.h.b16 %v641
      %v684 = vunpack.c.l.b16 %v642
      %v685 = vunpack.c.h.b16 %v642
      %v686 = vunpack.c.l.b16 %v643
      %v687 = vunpack.c.h.b16 %v643
      %v688 = vunpack.c.l.b16 %v644
      %v689 = vunpack.c.h.b16 %v644
      %v690 = vunpack.c.l.b16 %v645
      %v691 = vunpack.c.h.b16 %v645
      %v692 = vunpack.c.l.b16 %v646
      %v693 = vunpack.c.h.b16 %v646
      %v694 = vunpack.c.l.b16 %v647
      %v695 = vunpack.c.h.b16 %v647
      %v696 = vpack.c.b16 %v666, %v664
      %v697 = vpack.c.b16 %v667, %v665
      %v698 = vpack.c.b16 %v670, %v668
      %v699 = vpack.c.b16 %v671, %v669
      %v700 = vpack.c.b16 %v674, %v672
      %v701 = vpack.c.b16 %v675, %v673
      %v702 = vpack.c.b16 %v678, %v676
      %v703 = vpack.c.b16 %v679, %v677
      %v704 = vpack.c.b16 %v682, %v680
      %v705 = vpack.c.b16 %v683, %v681
      %v706 = vpack.c.b16 %v686, %v684
      %v707 = vpack.c.b16 %v687, %v685
      %v708 = vpack.c.b16 %v690, %v688
      %v709 = vpack.c.b16 %v691, %v689
      %v710 = vpack.c.b16 %v694, %v692
      %v711 = vpack.c.b16 %v695, %v693
      %728 = vmatprep.subr.bf16.mxu0 %v697
      %729 = vmatpush1.bf16.msra.mxu0 %v696
      %730 = vmatprep.subr.bf16.mxu0 %v699
      %731 = vmatpush1.bf16.msra.mxu0 %v698
      %732 = vmatprep.subr.bf16.mxu0 %v701
      %733 = vmatpush1.bf16.msra.mxu0 %v700
      %734 = vmatprep.subr.bf16.mxu0 %v703
      %735 = vmatpush1.bf16.msra.mxu0 %v702
      %736 = vmatprep.subr.bf16.mxu0 %v705
      %737 = vmatpush1.bf16.msra.mxu0 %v704
      %738 = vmatprep.subr.bf16.mxu0 %v707
      %739 = vmatpush1.bf16.msra.mxu0 %v706
      %740 = vmatprep.subr.bf16.mxu0 %v709
      %741 = vmatpush1.bf16.msra.mxu0 %v708
      %742 = vmatprep.subr.bf16.mxu0 %v711
      %743 = vmatpush1.bf16.msra.mxu0 %v710
      %744 = vmatprep.subr.bf16.mxu0 0
      %745 = vmatpush1.bf16.msra.mxu0 0
      %746 = vmatprep.subr.bf16.mxu0 0
      %747 = vmatpush1.bf16.msra.mxu0 0
      %748 = vmatprep.subr.bf16.mxu0 0
      %749 = vmatpush1.bf16.msra.mxu0 0
      %750 = vmatprep.subr.bf16.mxu0 0
      %751 = vmatpush1.bf16.msra.mxu0 0
      %752 = vmatprep.subr.bf16.mxu0 0
      %753 = vmatpush1.bf16.msra.mxu0 0
      %754 = vmatprep.subr.bf16.mxu0 0
      %755 = vmatpush1.bf16.msra.mxu0 0
      %756 = vmatprep.subr.bf16.mxu0 0
      %757 = vmatpush1.bf16.msra.mxu0 0
      %758 = vmatprep.subr.bf16.mxu0 0
      %759 = vmatpush1.bf16.msra.mxu0 0
      %760 = vmatprep.mubr.bf16.mxu0 0
      %761 = vmatmul.mubr.bf16.gmra.mrb[0].mxu0 %v625
      %v762 = vpop.f32.mrb[0].mxu0
      %v763 = vadd.f32 0.0, %v762
      %v764 = vpop.f32.mrb[0].mxu0
      %v765 = vadd.f32 0.0, %v764
      %v766 = vpop.f32.mrb[0].mxu0
      %v767 = vadd.f32 0.0, %v766
      %v768 = vpop.f32.mrb[0].mxu0
      %v769 = vadd.f32 0.0, %v768
      %770 = vmatprep.mubr.bf16.mxu0 0
      %771 = vmatmul.mubr.bf16.gmra.mrb[0].mxu0 %v626
      %v772 = vpop.f32.mrb[0].mxu0
      %v773 = vadd.f32 0.0, %v772
      %v774 = vpop.f32.mrb[0].mxu0
      %v775 = vadd.f32 0.0, %v774
      %v776 = vpop.f32.mrb[0].mxu0
      %v777 = vadd.f32 0.0, %v776
      %v778 = vpop.f32.mrb[0].mxu0
      %v779 = vadd.f32 0.0, %v778
      %780 = vmatprep.mubr.bf16.mxu0 0
      %781 = vmatmul.mubr.bf16.gmra.mrb[0].mxu0 %v627
      %v782 = vpop.f32.mrb[0].mxu0
      %v783 = vadd.f32 0.0, %v782
      %v784 = vpop.f32.mrb[0].mxu0
      %v785 = vadd.f32 0.0, %v784
      %v786 = vpop.f32.mrb[0].mxu0
      %v787 = vadd.f32 0.0, %v786
      %v788 = vpop.f32.mrb[0].mxu0
      %v789 = vadd.f32 0.0, %v788
      %790 = vmatprep.mubr.bf16.mxu0 0
      %791 = vmatmul.mubr.bf16.gmra.mrb[0].mxu0 %v628
      %v792 = vpop.f32.mrb[0].mxu0
      %v793 = vadd.f32 0.0, %v792
      %v794 = vpop.f32.mrb[0].mxu0
      %v795 = vadd.f32 0.0, %v794
      %v796 = vpop.f32.mrb[0].mxu0
      %v797 = vadd.f32 0.0, %v796
      %v798 = vpop.f32.mrb[0].mxu0
      %v799 = vadd.f32 0.0, %v798
      %800 = vmatprep.mubr.bf16.mxu0 0
      %801 = vmatmul.mubr.bf16.gmra.mrb[0].mxu0 %v629
      %v802 = vpop.f32.mrb[0].mxu0
      %v803 = vadd.f32 0.0, %v802
      %v804 = vpop.f32.mrb[0].mxu0
      %v805 = vadd.f32 0.0, %v804
      %v806 = vpop.f32.mrb[0].mxu0
      %v807 = vadd.f32 0.0, %v806
      %v808 = vpop.f32.mrb[0].mxu0
      %v809 = vadd.f32 0.0, %v808
      %810 = vmatprep.mubr.bf16.mxu0 0
      %811 = vmatmul.mubr.bf16.gmra.mrb[0].mxu0 %v630
      %v812 = vpop.f32.mrb[0].mxu0
      %v813 = vadd.f32 0.0, %v812
      %v814 = vpop.f32.mrb[0].mxu0
      %v815 = vadd.f32 0.0, %v814
      %v816 = vpop.f32.mrb[0].mxu0
      %v817 = vadd.f32 0.0, %v816
      %v818 = vpop.f32.mrb[0].mxu0
      %v819 = vadd.f32 0.0, %v818
      %820 = vmatprep.mubr.bf16.mxu0 0
      %821 = vmatmul.mubr.bf16.gmra.mrb[0].mxu0 %v631
      %v822 = vpop.f32.mrb[0].mxu0
      %v823 = vadd.f32 0.0, %v822
      %v824 = vpop.f32.mrb[0].mxu0
      %v825 = vadd.f32 0.0, %v824
      %v826 = vpop.f32.mrb[0].mxu0
      %v827 = vpop.f32.mrb[0].mxu0
      %828 = vdwg.mxu0
      %v829 = vmul.f32 %v587, %v763
      %v830 = vmul.f32 %v588, %v765
      %v831 = vmul.f32 %v590, %v767
      %v832 = vmul.f32 %v591, %v769
      %v833 = vmul.f32 %v593, %v773
      %v834 = vmul.f32 %v594, %v775
      %v835 = vmul.f32 %v596, %v777
      %v836 = vmul.f32 %v597, %v779
      %v837 = vmul.f32 %v599, %v783
      %v838 = vmul.f32 %v600, %v785
      %v839 = vmul.f32 %v602, %v787
      %v840 = vmul.f32 %v603, %v789
      %v841 = vmul.f32 %v605, %v793
      %v842 = vmul.f32 %v606, %v795
      %v843 = vmul.f32 %v608, %v797
      %v844 = vmul.f32 %v609, %v799
      %v845 = vmul.f32 %v611, %v803
      %v846 = vmul.f32 %v612, %v805
      %v847 = vmul.f32 %v614, %v807
      %v848 = vmul.f32 %v615, %v809
      %v849 = vmul.f32 %v617, %v813
      %v850 = vmul.f32 %v618, %v815
      %v851 = vmul.f32 %v620, %v817
      %v852 = vmul.f32 %v621, %v819
      %v853 = vmul.f32 %v623, %v823
      %v854 = vmul.f32 %v624, %v825
      %v855 = vpack.c.bf16 %v831, %v829
      %v856 = vpack.c.bf16 %v832, %v830
      %v857 = vpack.c.bf16 %v835, %v833
      %v858 = vpack.c.bf16 %v836, %v834
      %v859 = vpack.c.bf16 %v839, %v837
      %v860 = vpack.c.bf16 %v840, %v838
      %v861 = vpack.c.bf16 %v843, %v841
      %v862 = vpack.c.bf16 %v844, %v842
      %v863 = vpack.c.bf16 %v847, %v845
      %v864 = vpack.c.bf16 %v848, %v846
      %v865 = vpack.c.bf16 %v851, %v849
      %v866 = vpack.c.bf16 %v852, %v850
      %v867 = vpack.c.bf16 %v853, %v853
      %v868 = vpack.c.bf16 %v854, %v854
      %v869 = vld [vmem:[%s3] sm:$0xf]
      %v870 = vld [vmem:[%s3 + $0x4] sm:$0xf]
      %v871 = vld [vmem:[%s3 + $0x8] sm:$0xf]
      %v872 = vld [vmem:[%s3 + $0xc] sm:$0xf]
      %v873 = vld [vmem:[%s3 + $0x10] sm:$0xf]
      %v874 = vld [vmem:[%s3 + $0x14] sm:$0xf]
      %v875 = vld [vmem:[%s3 + $0x18] sm:$0xf]
      %v876 = vld [vmem:[%s3 + $0x1c] sm:$0xf]
      %v877 = vld [vmem:[%s3 + $0x20] sm:$0xf]
      %v878 = vld [vmem:[%s3 + $0x24] sm:$0xf]
      %v879 = vld [vmem:[%s3 + $0x28] sm:$0xf]
      %v880 = vld [vmem:[%s3 + $0x2c] sm:$0xf]
      %v881 = vld [vmem:[%s3 + $0x30] sm:$0xf]
      %v882 = vld [vmem:[%s3 + $0x34] sm:$0xf]
      %v883 = vld [vmem:[%s3 + $0x38] sm:$0xf]
      %v884 = vld [vmem:[%s3 + $0x3c] sm:$0xf]
      %v885 = vld [vmem:[%s3 + $0x40] sm:$0xf]
      %v886 = vld [vmem:[%s3 + $0x44] sm:$0xf]
      %v887 = vld [vmem:[%s3 + $0x48] sm:$0xf]
      %v888 = vld [vmem:[%s3 + $0x4c] sm:$0xf]
      %v889 = vld [vmem:[%s3 + $0x50] sm:$0xf]
      %v890 = vld [vmem:[%s3 + $0x54] sm:$0xf]
      %v891 = vld [vmem:[%s3 + $0x58] sm:$0xf]
      %v892 = vld [vmem:[%s3 + $0x5c] sm:$0xf]
      %v893 = vld [vmem:[%s3 + $0x60] sm:$0xf]
      %v894 = vld [vmem:[%s3 + $0x64] sm:$0xf]
      %v895 = vld [vmem:[%s3 + $0x68] sm:$0xf]
      %v896 = vld [vmem:[%s3 + $0x6c] sm:$0xf]
      %v897 = vld [vmem:[%s3 + $0x70] sm:$0xf]
      %v898 = vld [vmem:[%s3 + $0x74] sm:$0xf]
      %v899 = vld [vmem:[%s3 + $0x78] sm:$0xf]
      %v900 = vld [vmem:[%s3 + $0x7c] sm:$0xf]
      %v901 = vld [vmem:[%s4] sm:$0x1]
      %v903 = vlaneseq
      %v904 = vshrl.u32 %v903, 7
      %v905 = vsub.s32 0, %v904
      %v906 = vrot.slane %v901, %v905
      %v940 = vunpack.c.l.b16 %v869
      %v941 = vunpack.c.l.b16 %v870
      %v942 = vunpack.c.l.b16 %v871
      %v943 = vunpack.c.l.b16 %v872
      %v944 = vunpack.c.l.b16 %v873
      %v945 = vunpack.c.l.b16 %v874
      %v946 = vunpack.c.l.b16 %v875
      %v947 = vunpack.c.l.b16 %v876
      %v948 = vunpack.c.l.b16 %v877
      %v949 = vunpack.c.l.b16 %v878
      %v950 = vunpack.c.l.b16 %v879
      %v951 = vunpack.c.l.b16 %v880
      %v952 = vunpack.c.l.b16 %v881
      %v953 = vunpack.c.l.b16 %v882
      %v954 = vunpack.c.l.b16 %v883
      %v955 = vunpack.c.l.b16 %v884
      %v956 = vunpack.c.l.b16 %v885
      %v957 = vunpack.c.l.b16 %v886
      %v958 = vunpack.c.l.b16 %v887
      %v959 = vunpack.c.l.b16 %v888
      %v960 = vunpack.c.l.b16 %v889
      %v961 = vunpack.c.l.b16 %v890
      %v962 = vunpack.c.l.b16 %v891
      %v963 = vunpack.c.l.b16 %v892
      %v964 = vunpack.c.l.b16 %v893
      %v965 = vunpack.c.l.b16 %v894
      %v966 = vunpack.c.l.b16 %v895
      %v967 = vunpack.c.l.b16 %v896
      %v968 = vunpack.c.l.b16 %v897
      %v969 = vunpack.c.l.b16 %v898
      %v970 = vunpack.c.l.b16 %v899
      %v971 = vunpack.c.l.b16 %v900
      %v972 = vpack.c.b16 %v941, %v940
      %v973 = vpack.c.b16 %v943, %v942
      %v974 = vpack.c.b16 %v945, %v944
      %v975 = vpack.c.b16 %v947, %v946
      %v976 = vpack.c.b16 %v949, %v948
      %v977 = vpack.c.b16 %v951, %v950
      %v978 = vpack.c.b16 %v953, %v952
      %v979 = vpack.c.b16 %v955, %v954
      %v980 = vpack.c.b16 %v957, %v956
      %v981 = vpack.c.b16 %v959, %v958
      %v982 = vpack.c.b16 %v961, %v960
      %v983 = vpack.c.b16 %v963, %v962
      %v984 = vpack.c.b16 %v965, %v964
      %v985 = vpack.c.b16 %v967, %v966
      %v986 = vpack.c.b16 %v969, %v968
      %v987 = vpack.c.b16 %v971, %v970
      %1004 = vmatprep.subr.bf16.mxu0 0
      %1005 = vmatpush1.bf16.msra.mxu0 %v972
      %1006 = vmatprep.subr.bf16.mxu0 0
      %1007 = vmatpush1.bf16.msra.mxu0 %v973
      %1008 = vmatprep.subr.bf16.mxu0 0
      %1009 = vmatpush1.bf16.msra.mxu0 %v974
      %1010 = vmatprep.subr.bf16.mxu0 0
      %1011 = vmatpush1.bf16.msra.mxu0 %v975
      %1012 = vmatprep.subr.bf16.mxu0 0
      %1013 = vmatpush1.bf16.msra.mxu0 %v976
      %1014 = vmatprep.subr.bf16.mxu0 0
      %1015 = vmatpush1.bf16.msra.mxu0 %v977
      %1016 = vmatprep.subr.bf16.mxu0 0
      %1017 = vmatpush1.bf16.msra.mxu0 %v978
      %1018 = vmatprep.subr.bf16.mxu0 0
      %1019 = vmatpush1.bf16.msra.mxu0 %v979
      %1020 = vmatprep.subr.bf16.mxu0 0
      %1021 = vmatpush1.bf16.msra.mxu0 %v980
      %1022 = vmatprep.subr.bf16.mxu0 0
      %1023 = vmatpush1.bf16.msra.mxu0 %v981
      %1024 = vmatprep.subr.bf16.mxu0 0
      %1025 = vmatpush1.bf16.msra.mxu0 %v982
      %1026 = vmatprep.subr.bf16.mxu0 0
      %1027 = vmatpush1.bf16.msra.mxu0 %v983
      %1028 = vmatprep.subr.bf16.mxu0 0
      %1029 = vmatpush1.bf16.msra.mxu0 %v984
      %1030 = vmatprep.subr.bf16.mxu0 0
      %1031 = vmatpush1.bf16.msra.mxu0 %v985
      %1032 = vmatprep.subr.bf16.mxu0 0
      %1033 = vmatpush1.bf16.msra.mxu0 %v986
      %1034 = vmatprep.subr.bf16.mxu0 0
      %1035 = vmatpush1.bf16.msra.mxu0 %v987
      %1036 = vmatprep.mubr.bf16.mxu0 %v856
      %1037 = vmatmul.mubr.bf16.gmra.mrb[0].mxu0 %v855
      %v1038 = vpop.f32.mrb[0].mxu0
      %v1039 = vadd.f32 %v906, %v1038
      %v1040 = vpop.f32.mrb[0].mxu0
      %v1041 = vpop.f32.mrb[0].mxu0
      %v1042 = vadd.f32 %v906, %v1041
      %v1043 = vpop.f32.mrb[0].mxu0
      %1044 = vmatprep.mubr.bf16.mxu0 %v858
      %1045 = vmatmul.mubr.bf16.gmra.mrb[0].mxu0 %v857
      %v1046 = vpop.f32.mrb[0].mxu0
      %v1047 = vadd.f32 %v906, %v1046
      %v1048 = vpop.f32.mrb[0].mxu0
      %v1049 = vpop.f32.mrb[0].mxu0
      %v1050 = vadd.f32 %v906, %v1049
      %v1051 = vpop.f32.mrb[0].mxu0
      %1052 = vmatprep.mubr.bf16.mxu0 %v860
      %1053 = vmatmul.mubr.bf16.gmra.mrb[0].mxu0 %v859
      %v1054 = vpop.f32.mrb[0].mxu0
      %v1055 = vadd.f32 %v906, %v1054
      %v1056 = vpop.f32.mrb[0].mxu0
      %v1057 = vpop.f32.mrb[0].mxu0
      %v1058 = vadd.f32 %v906, %v1057
      %v1059 = vpop.f32.mrb[0].mxu0
      %1060 = vmatprep.mubr.bf16.mxu0 %v862
      %1061 = vmatmul.mubr.bf16.gmra.mrb[0].mxu0 %v861
      %v1062 = vpop.f32.mrb[0].mxu0
      %v1063 = vadd.f32 %v906, %v1062
      %v1064 = vpop.f32.mrb[0].mxu0
      %v1065 = vpop.f32.mrb[0].mxu0
      %v1066 = vadd.f32 %v906, %v1065
      %v1067 = vpop.f32.mrb[0].mxu0
      %1068 = vmatprep.mubr.bf16.mxu0 %v864
      %1069 = vmatmul.mubr.bf16.gmra.mrb[0].mxu0 %v863
      %v1070 = vpop.f32.mrb[0].mxu0
      %v1071 = vadd.f32 %v906, %v1070
      %v1072 = vpop.f32.mrb[0].mxu0
      %v1073 = vpop.f32.mrb[0].mxu0
      %v1074 = vadd.f32 %v906, %v1073
      %v1075 = vpop.f32.mrb[0].mxu0
      %1076 = vmatprep.mubr.bf16.mxu0 %v866
      %1077 = vmatmul.mubr.bf16.gmra.mrb[0].mxu0 %v865
      %v1078 = vpop.f32.mrb[0].mxu0
      %v1079 = vadd.f32 %v906, %v1078
      %v1080 = vpop.f32.mrb[0].mxu0
      %v1081 = vpop.f32.mrb[0].mxu0
      %v1082 = vadd.f32 %v906, %v1081
      %v1083 = vpop.f32.mrb[0].mxu0
      %1084 = vmatprep.mubr.bf16.mxu0 %v868
      %1085 = vmatmul.mubr.bf16.gmra.mrb[0].mxu0 %v867
      %v1086 = vpop.f32.mrb[0].mxu0
      %v1087 = vadd.f32 %v906, %v1086
      %v1088 = vpop.f32.mrb[0].mxu0
      %v1089 = vpop.f32.mrb[0].mxu0
      %v1090 = vpop.f32.mrb[0].mxu0
      %1091 = vdwg.mxu0
      %v1092 = vmax.f32 %v1039, 0.0
      %v1093 = vmax.f32 %v1042, 0.0
      %v1094 = vmax.f32 %v1047, 0.0
      %v1095 = vmax.f32 %v1050, 0.0
      %v1096 = vmax.f32 %v1055, 0.0
      %v1097 = vmax.f32 %v1058, 0.0
      %v1098 = vmax.f32 %v1063, 0.0
      %v1099 = vmax.f32 %v1066, 0.0
      %v1100 = vmax.f32 %v1071, 0.0
      %v1101 = vmax.f32 %v1074, 0.0
      %v1102 = vmax.f32 %v1079, 0.0
      %v1103 = vmax.f32 %v1082, 0.0
      %v1104 = vmax.f32 %v1087, 0.0
      %vm1105 = vcmask 261120
      %1106 = vst.msk [vmem:[%s226] sm:$0xff] %vm1105, %v1092
      %1107 = vst.msk [vmem:[%s226 + $0x8] sm:$0xff] %vm1105, %v1093
      %1108 = vst.msk [vmem:[%s226 + $0x10] sm:$0xff] %vm1105, %v1094
      %1109 = vst.msk [vmem:[%s226 + $0x18] sm:$0xff] %vm1105, %v1095
      %1110 = vst.msk [vmem:[%s226 + $0x20] sm:$0xff] %vm1105, %v1096
      %1111 = vst.msk [vmem:[%s226 + $0x28] sm:$0xff] %vm1105, %v1097
      %1112 = vst.msk [vmem:[%s226 + $0x30] sm:$0xff] %vm1105, %v1098
      %1113 = vst.msk [vmem:[%s226 + $0x38] sm:$0xff] %vm1105, %v1099
      %1114 = vst.msk [vmem:[%s226 + $0x40] sm:$0xff] %vm1105, %v1100
      %1115 = vst.msk [vmem:[%s226 + $0x48] sm:$0xff] %vm1105, %v1101
      %1116 = vst.msk [vmem:[%s226 + $0x50] sm:$0xff] %vm1105, %v1102
      %1117 = vst.msk [vmem:[%s226 + $0x58] sm:$0xff] %vm1105, %v1103
      %1118 = vst.msk [vmem:[%s226 + $0x60] sm:$0xff] %vm1105, %v1104
      %s1119 = smul.u32 13, %s16
      %p1120 = scmp.lt.s32.totalorder %s1119, 25
      %s1121 = scalar_select %p1120, %s1119, 25
      %s1122 = smul.addr %s1121, 8
      %s1123 = scalar_lea.vmem %s5, %s1122
      // Predicated region
      $region41: #{hnet_forward.1} parent=39 // pred_check
        %p1124 = pneg %p144
      $region42: #{hnet_forward.1} parent=39 // pred_check_branch
        %1126 = sbr.rel (%p1124) target = $region44
      $region43: #{hnet_forward.1} parent=39 // pred_region
        %s1127 = smul.u32 13, %s16
      $region44: #{hnet_forward.1} parent=39 // pred_fallthru
        _
    $region40: #{hnet_forward.1} parent=5 // pred_fallthru
      _
    %p1128 = scmp.le.s32.totalorder 2, %s11
    // Predicated region
    $region45: #{hnet_forward.1} parent=5 // pred_check
      %p1129 = pneg %p1128
    $region46: #{hnet_forward.1} parent=5 // pred_check_branch
      %1131 = sbr.rel (%p1129) target = $region48
    $region47: #{hnet_forward.1} parent=5 // pred_region
      %s1132 = ssub.s32 %s11, 2
      // Predicated region
      $region49: #{hnet_forward.1} parent=47 // pred_check
        %p1133 = pneg %p150
      $region50: #{hnet_forward.1} parent=47 // pred_check_branch
        %1135 = sbr.rel (%p1133) target = $region52
      $region51: #{hnet_forward.1} parent=47 // pred_region
        %s1136 = smul.u32 13, %s17
        %p1137 = scmp.lt.s32.totalorder %s1136, 25
        %s1138 = scalar_select %p1137, %s1136, 25
        %s1139 = smul.addr %s1138, 8
        %s1140 = scalar_lea.vmem %s5, %s1139
      $region52: #{hnet_forward.1} parent=47 // pred_fallthru
        _
    $region48: #{hnet_forward.1} parent=5 // pred_fallthru
      _
  $region6: #{hnet_forward.1} parent=0 // loop_footer
    %s15 = sadd.s32 1, %s11
  $region7: #{hnet_forward.1} parent=0 // loop_footer_branch
    %10 = sbr.rel target = $region3
  $region8: #{hnet_forward.1} parent=0 // loop_exit
    _

</llo_original>
